<compile_context>
chip_gen: v7x
topology: tpu7x:2x2x1
jax: 0.10.0
libtpu: 0.0.40
codegen_flags: <defaults>
</compile_context>

<pallas_src>
import functools

import jax
import jax.numpy as jnp
from jax.experimental import pallas as pl
from jax.experimental.pallas import tpu as pltpu


def _round_up(x: int, m: int) -> int:
    return (x + m - 1) // m * m


def _sublane(dtype) -> int:
    # Sublane multiple for the second-minor dim: f32 -> 8, bf16 -> 16, int8 -> 32.
    return {4: 8, 2: 16, 1: 32}.get(jnp.dtype(dtype).itemsize, 8)


def lora_kernel(x_ref, a_ref, b_ref, o_ref, xa_ref, *, alpha):
    # Compute the rank-narrow x @ A only once per row tile (first N step) and
    # cache the alpha-scaled result in VMEM scratch; reuse across all N tiles.
    @pl.when(pl.program_id(1) == 0)
    def _():
        xa = jnp.dot(x_ref[...], a_ref[...], preferred_element_type=jnp.float32)
        xa_ref[...] = xa * alpha

    # Cast the tiny [TM, rank] intermediate to B's dtype (keeps the MXU on its
    # native low-precision path when B is bf16); accumulate in f32.
    xa = xa_ref[...].astype(b_ref.dtype)
    o_ref[...] = jnp.dot(xa, b_ref[...],
                         preferred_element_type=jnp.float32).astype(o_ref.dtype)


def lora_forward(x, A, B, alpha=1.0, *, out_dtype=None, tm=None, tn=None):
    """LoRA forward: alpha * (x @ A @ B).

    x: [M, in_feat]   A: [in_feat, rank]   B: [rank, out_feat] -> [M, out_feat]
    """
    M, in_feat = x.shape
    rank, out_feat = B.shape
    assert A.shape == (in_feat, rank)
    out_dtype = out_dtype or x.dtype

    x_item = jnp.dtype(x.dtype).itemsize
    a_item = jnp.dtype(A.dtype).itemsize
    b_item = jnp.dtype(B.dtype).itemsize
    o_item = jnp.dtype(out_dtype).itemsize
    sub = max(_sublane(x.dtype), _sublane(out_dtype))

    # --- Generation-aware VMEM budget ----------------------------------------
    try:
        vmem_cap = int(pltpu.get_tpu_info().vmem_capacity_bytes)
    except Exception:
        vmem_cap = 64 * 1024 * 1024  # conservative: v7x per-TensorCore VMEM
    budget = int(0.72 * vmem_cap)    # ~46 MiB on v7x, ~92 MiB on v5e/v6e

    # --- Tile selection -------------------------------------------------------
    # Lane-dense output tile: multiple of 128 (never exceeding out_feat), or the
    # full out_feat when it is narrower than one vreg lane row.
    if tn is None:
        if out_feat % 128 == 0:
            tn = min(1024, out_feat)
        elif out_feat < 128:
            tn = out_feat
        else:
            tn = min(1024, (out_feat // 128) * 128)
    assert tn % 128 == 0 or tn == out_feat, "tn must be lane-aligned or full"

    lane = lambda n: _round_up(n, 128)
    b_rows = _round_up(rank, _sublane(B.dtype))
    # Resident VMEM: A single-buffered (lane-padded rank), B double-buffered.
    fixed = in_feat * lane(rank) * a_item + 2 * b_rows * lane(tn) * b_item
    # Per-row VMEM: double-buffered x + out tiles, plus the f32 xa scratch.
    per_row = 2 * in_feat * x_item + 2 * lane(tn) * o_item + lane(rank) * 4

    if tm is None:
        tm = (max(budget - fixed, per_row * sub) // per_row) // sub * sub
        tm = max(sub, min(2048, tm))
        tm = min(tm, _round_up(M, sub))
    assert tm % sub == 0 or tm == M, "tm must be sublane-aligned or full"

    grid = (pl.cdiv(M, tm), pl.cdiv(out_feat, tn))

    working = fixed + tm * per_row
    vmem_limit = int(min(0.85 * vmem_cap, working + (16 << 20)))

    cost = pl.CostEstimate(
        flops=2 * M * rank * (in_feat + out_feat),
        transcendentals=0,
        bytes_accessed=(M * in_feat * x_item + in_feat * rank * a_item
                        + rank * out_feat * b_item + M * out_feat * o_item),
    )

    kernel = functools.partial(lora_kernel, alpha=float(alpha))
    return pl.pallas_call(
        kernel,
        out_shape=jax.ShapeDtypeStruct((M, out_feat), out_dtype),
        grid=grid,
        in_specs=[
            # x streams over M; block index constant in j, so it is not re-fetched
            # while the inner N loop runs.
            pl.BlockSpec((tm, in_feat), lambda i, j: (i, 0)),
            # Tiny A stays VMEM-resident; single buffer (index never changes).
            pl.BlockSpec((in_feat, rank), lambda i, j: (0, 0),
                         pipeline_mode=pl.Buffered(1)),
            # B streams over N.
            pl.BlockSpec((rank, tn), lambda i, j: (0, j)),
        ],
        out_specs=pl.BlockSpec((tm, tn), lambda i, j: (i, j)),
        scratch_shapes=[pltpu.VMEM((tm, rank), jnp.float32)],
        compiler_params=pltpu.CompilerParams(
            # N axis must iterate sequentially per core for the xa cache to be
            # valid; M axis shards across TensorCores on megacore parts.
            dimension_semantics=("parallel", "arbitrary"),
            vmem_limit_bytes=vmem_limit,
        ),
        cost_estimate=cost,
    )(x, A, B)


if __name__ == "__main__":
    # Module hyper-params (small, consistent with the forward): in=32, out=32, rank=8.
    batch, seq, in_feat, out_feat, rank = 2, 8, 32, 32, 8
    alpha = 1.0

    key = jax.random.PRNGKey(0)
    kx, ka, kb, kx2, ka2, kb2 = jax.random.split(key, 6)

    # Deterministic parameter init mirroring the PyTorch __init__:
    #   A ~ randn(in_feat, rank) / sqrt(rank),  B = zeros(rank, out_feat)
    scaling_factor = 1.0 / jnp.sqrt(jnp.float32(rank))
    A = jax.random.normal(ka, (in_feat, rank), dtype=jnp.float32) * scaling_factor
    B = jnp.zeros((rank, out_feat), dtype=jnp.float32)

    x = jax.random.normal(kx, (batch, seq, in_feat), dtype=jnp.float32)
    x2d = x.reshape(batch * seq, in_feat)  # flatten batch/seq into M

    # --- Faithful-init check (B == 0 -> output is all zeros) -----------------
    out = jax.block_until_ready(lora_forward(x2d, A, B, alpha=alpha))
    ref = alpha * (x2d @ A @ B)
    assert out.shape == (batch * seq, out_feat)
    assert jnp.allclose(out, ref, atol=1e-5), "mismatch vs reference (zero-B case)"

    # --- Nonzero-B check (exercises the real matmul path) --------------------
    B_nz = jax.random.normal(kb, (rank, out_feat), dtype=jnp.float32) * 0.02
    out_nz = jax.block_until_ready(lora_forward(x2d, A, B_nz, alpha=0.5))
    ref_nz = 0.5 * (x2d @ A @ B_nz)
    assert jnp.allclose(out_nz, ref_nz, atol=1e-4, rtol=1e-4), \
        "mismatch vs reference (nonzero-B case)"

    # --- Multi-block grid with edge (remainder) tiles in both M and N --------
    M2, in2, out2, r2 = 160, 96, 320, 8
    x_big = jax.random.normal(kx2, (M2, in2), dtype=jnp.float32)
    A_big = jax.random.normal(ka2, (in2, r2), dtype=jnp.float32) / jnp.sqrt(jnp.float32(r2))
    B_big = jax.random.normal(kb2, (r2, out2), dtype=jnp.float32) * 0.02
    out_big = jax.block_until_ready(
        lora_forward(x_big, A_big, B_big, alpha=1.5, tm=64, tn=128))
    ref_big = 1.5 * (x_big @ A_big @ B_big)
    assert out_big.shape == (M2, out2)
    assert jnp.allclose(out_big, ref_big, atol=1e-3, rtol=1e-4), \
        "mismatch vs reference (tiled/edge-block case)"

    print("KERNEL_OK")
</pallas_src>

<mosaic_0001>
module attributes {stable_mosaic.version = 11 : i64} {
  func.func @lora_kernel(%arg0: i32, %arg1: i32, %arg2: memref<16x32xf32, #tpu.memory_space<vmem>>, %arg3: memref<32x8xf32, #tpu.memory_space<vmem>>, %arg4: memref<8x32xf32, #tpu.memory_space<vmem>>, %arg5: memref<16x32xf32, #tpu.memory_space<vmem>>, %arg6: memref<16x8xf32, #tpu.memory_space<vmem>>) attributes {dimension_semantics = [#tpu.dimension_semantics<parallel>, #tpu.dimension_semantics<arbitrary>], iteration_bounds = array<i64: 1, 1>, scalar_prefetch = 0 : i64, scratch_operands = 1 : i64, tpu.core_type = #tpu.core_type<tc>, window_params = [{transform_indices = @transform_0, window_bounds = array<i64: 16, 32>}, {pipeline_mode = #tpu.pipeline_mode<synchronous>, transform_indices = @transform_1, window_bounds = array<i64: 32, 8>}, {transform_indices = @transform_2, window_bounds = array<i64: 8, 32>}, {transform_indices = @transform_3, window_bounds = array<i64: 16, 32>}]} {
    %c0_i32 = arith.constant 0 : i32
    %0 = arith.cmpi eq, %arg1, %c0_i32 : i32
    %1 = arith.extui %0 : i1 to i32
    %c0_i32_0 = arith.constant 0 : i32
    %2 = arith.cmpi ne, %1, %c0_i32_0 : i32
    scf.if %2 {
      %c0_6 = arith.constant 0 : index
      %c0_7 = arith.constant 0 : index
      %7 = vector.load %arg2[%c0_6, %c0_7] : memref<16x32xf32, #tpu.memory_space<vmem>>, vector<16x32xf32>
      %c0_8 = arith.constant 0 : index
      %c0_9 = arith.constant 0 : index
      %8 = vector.load %arg3[%c0_8, %c0_9] : memref<32x8xf32, #tpu.memory_space<vmem>>, vector<32x8xf32>
      %cst_10 = arith.constant dense<0.000000e+00> : vector<16x8xf32>
      %9 = tpu.matmul %7, %8, %cst_10 {dimension_numbers = #tpu.dot_dimension_numbers<[1], [0], [0], [1], [0, 0, 1, 1], [], []>} : vector<16x32xf32>, vector<32x8xf32>, vector<16x8xf32> -> vector<16x8xf32>
      %cst_11 = arith.constant 1.000000e+00 : f32
      %10 = vector.broadcast %cst_11 : f32 to vector<16x8xf32>
      %11 = arith.mulf %9, %10 : vector<16x8xf32>
      %c0_12 = arith.constant 0 : index
      %c0_13 = arith.constant 0 : index
      %12 = vector.load %arg6[%c0_12, %c0_13] : memref<16x8xf32, #tpu.memory_space<vmem>>, vector<16x8xf32>
      tpu.vector_store %arg6[%c0_12, %c0_13], %11 {strides = array<i32>} : memref<16x8xf32, #tpu.memory_space<vmem>>, vector<16x8xf32>,
    } else {
    }
    %c0 = arith.constant 0 : index
    %c0_1 = arith.constant 0 : index
    %3 = vector.load %arg6[%c0, %c0_1] : memref<16x8xf32, #tpu.memory_space<vmem>>, vector<16x8xf32>
    %c0_2 = arith.constant 0 : index
    %c0_3 = arith.constant 0 : index
    %4 = vector.load %arg4[%c0_2, %c0_3] : memref<8x32xf32, #tpu.memory_space<vmem>>, vector<8x32xf32>
    %cst = arith.constant dense<0.000000e+00> : vector<16x32xf32>
    %5 = tpu.matmul %3, %4, %cst {dimension_numbers = #tpu.dot_dimension_numbers<[1], [0], [0], [1], [0, 0, 1, 1], [], []>} : vector<16x8xf32>, vector<8x32xf32>, vector<16x32xf32> -> vector<16x32xf32>
    %c0_4 = arith.constant 0 : index
    %c0_5 = arith.constant 0 : index
    %6 = vector.load %arg5[%c0_4, %c0_5] : memref<16x32xf32, #tpu.memory_space<vmem>>, vector<16x32xf32>
    tpu.vector_store %arg5[%c0_4, %c0_5], %5 {strides = array<i32>} : memref<16x32xf32, #tpu.memory_space<vmem>>, vector<16x32xf32>,
    return
  }
  func.func @transform_0(%arg0: i32, %arg1: i32) -> (i32, i32) {
    %c0_i32 = arith.constant 0 : i32
    %c0_i32_0 = arith.constant 0 : i32
    return %arg0, %c0_i32 : i32, i32
  }
  func.func @transform_1(%arg0: i32, %arg1: i32) -> (i32, i32) {
    %c0_i32 = arith.constant 0 : i32
    %c0_i32_0 = arith.constant 0 : i32
    %c0_i32_1 = arith.constant 0 : i32
    return %c0_i32, %c0_i32_0 : i32, i32
  }
  func.func @transform_2(%arg0: i32, %arg1: i32) -> (i32, i32) {
    %c0_i32 = arith.constant 0 : i32
    %c0_i32_0 = arith.constant 0 : i32
    return %c0_i32, %arg1 : i32, i32
  }
  func.func @transform_3(%arg0: i32, %arg1: i32) -> (i32, i32) {
    %c0_i32 = arith.constant 0 : i32
    return %arg0, %arg1 : i32, i32
  }
}

</mosaic_0001>

<llo_original>
// kernel: tpu_custom_call.1
$region0: #{tpu_custom_call.1}
  #allocation0 [shape = 'u32[]', space=smem, size = 0x4, offset = 0x4, fixed_abs, tag = 'smem constant byte address 0x4 - core index']
  #allocation1 [shape = 'u32[144,128]{1,0:T(1,128)}', space=vmem, size = 0x12000, scoped, tag = 'internal scratch']
  #allocation2 [shape = 'f32[16,8]{1,0:T(8,128)}', space=vmem, size = 0x2000, scoped, tag = 'scratch operand']
  %s0 = inlined_call_operand.vmem [shape: f32[16,32], index: 0, kind: input, shape index: {}]
  %s1 = inlined_call_operand.vmem [shape: f32[32,8], index: 1, kind: input, shape index: {}]
  %s2 = inlined_call_operand.vmem [shape: f32[8,32], index: 2, kind: input, shape index: {}]
  %s3 = inlined_call_operand.hbm [shape: f32[16,32], index: 3, kind: output, shape index: {}]
  %s4 = sld [smem:[#allocation0]]
  $region26: #{tpu_custom_call.1} parent=0
    _
  %s6 = ssub.s32 1, %s4
  %s7 = scalar_select 0, %s6, %s4
  $region1: #{tpu_custom_call.1} parent=0
    #allocation3 [shape = 'u8[8192]{0}', space=vmem, size = 0x2000, scoped, tag = 'output window, operand 0, single buffered']
    #allocation4 [shape = 's32[1]{0}', space=sflag, size = 0x4, scoped, tag = 'scoped memory for tpu_custom_call.1']
    %8 = vsyncpa [#allocation4], 0
    // Predicated region
    $region2: #{tpu_custom_call.1} parent=1 // pred_check
      _
    $region3: #{tpu_custom_call.1} parent=1 // pred_check_branch
      %10 = sbr.rel (0) target = $region5
    $region4: #{tpu_custom_call.1} parent=1 // pred_region
      _
    $region5: #{tpu_custom_call.1} parent=1 // pred_fallthru
      _
    // Predicated region
    $region6: #{tpu_custom_call.1} parent=1 // pred_check
      _
    $region7: #{tpu_custom_call.1} parent=1 // pred_check_branch
      %12 = sbr.rel (0) target = $region9
    $region8: #{tpu_custom_call.1} parent=1 // pred_region
      _
    $region9: #{tpu_custom_call.1} parent=1 // pred_fallthru
      _
    // Predicated region
    $region10: #{tpu_custom_call.1} parent=1 // pred_check
      _
    $region11: #{tpu_custom_call.1} parent=1 // pred_check_branch
      %14 = sbr.rel (0) target = $region13
    $region12: #{tpu_custom_call.1} parent=1 // pred_region
      _
    $region13: #{tpu_custom_call.1} parent=1 // pred_fallthru
      _
    %p15 = scmp.eq.s32.totalorder 0, 0
    // Predicated region
    $region14: #{tpu_custom_call.1} parent=1 // pred_check
      %p16 = pneg %p15
    $region15: #{tpu_custom_call.1} parent=1 // pred_check_branch
      %18 = sbr.rel (%p16) target = $region17
    $region16: #{tpu_custom_call.1} parent=1 // pred_region
      %v19 = vld [vmem:[%s0] sm:$0xff]
      %v20 = vld [vmem:[%s0 + $0x8] sm:$0xff]
      %v21 = vld [vmem:[%s1] sm:$0xff]
      %v22 = vld [vmem:[%s1 + $0x8] sm:$0xff]
      %v23 = vld [vmem:[%s1 + $0x10] sm:$0xff]
      %v24 = vld [vmem:[%s1 + $0x18] sm:$0xff]
      %vm25 = vcmask 261120
      %v27 = vsel %vm25, %v19, 0
      %v30 = vsel %vm25, %v20, 0
      %32 = vmatprep.subr.mxu0 0.0
      %33 = vmatpush1.msra.mxu0 %v21
      %34 = vmatprep.subr.mxu0 0.0
      %35 = vmatpush1.msra.mxu0 %v22
      %36 = vmatprep.subr.mxu0 0.0
      %37 = vmatpush1.msra.mxu0 %v23
      %38 = vmatprep.subr.mxu0 0.0
      %39 = vmatpush1.msra.mxu0 %v24
      %40 = vmatprep.subr.mxu0 0.0
      %41 = vmatpush1.msra.mxu0 0.0
      %42 = vmatprep.subr.mxu0 0.0
      %43 = vmatpush1.msra.mxu0 0.0
      %44 = vmatprep.subr.mxu0 0.0
      %45 = vmatpush1.msra.mxu0 0.0
      %46 = vmatprep.subr.mxu0 0.0
      %47 = vmatpush1.msra.mxu0 0.0
      %48 = vmatprep.subr.mxu0 0.0
      %49 = vmatpush1.msra.mxu0 0.0
      %50 = vmatprep.subr.mxu0 0.0
      %51 = vmatpush1.msra.mxu0 0.0
      %52 = vmatprep.subr.mxu0 0.0
      %53 = vmatpush1.msra.mxu0 0.0
      %54 = vmatprep.subr.mxu0 0.0
      %55 = vmatpush1.msra.mxu0 0.0
      %56 = vmatprep.subr.mxu0 0.0
      %57 = vmatpush1.msra.mxu0 0.0
      %58 = vmatprep.subr.mxu0 0.0
      %59 = vmatpush1.msra.mxu0 0.0
      %60 = vmatprep.subr.mxu0 0.0
      %61 = vmatpush1.msra.mxu0 0.0
      %62 = vmatprep.subr.mxu0 0.0
      %63 = vmatpush1.msra.mxu0 0.0
      %64 = vmatprep.subr.mxu0 0.0
      %65 = vmatpush1.msra.mxu0 0.0
      %66 = vmatprep.subr.mxu0 0.0
      %67 = vmatpush1.msra.mxu0 0.0
      %68 = vmatprep.subr.mxu0 0.0
      %69 = vmatpush1.msra.mxu0 0.0
      %70 = vmatprep.subr.mxu0 0.0
      %71 = vmatpush1.msra.mxu0 0.0
      %72 = vmatprep.subr.mxu0 0.0
      %73 = vmatpush1.msra.mxu0 0.0
      %74 = vmatprep.subr.mxu0 0.0
      %75 = vmatpush1.msra.mxu0 0.0
      %76 = vmatprep.subr.mxu0 0.0
      %77 = vmatpush1.msra.mxu0 0.0
      %78 = vmatprep.subr.mxu0 0.0
      %79 = vmatpush1.msra.mxu0 0.0
      %80 = vmatprep.subr.mxu0 0.0
      %81 = vmatpush1.msra.mxu0 0.0
      %82 = vmatprep.subr.mxu0 0.0
      %83 = vmatpush1.msra.mxu0 0.0
      %84 = vmatprep.subr.mxu0 0.0
      %85 = vmatpush1.msra.mxu0 0.0
      %86 = vmatprep.subr.mxu0 0.0
      %87 = vmatpush1.msra.mxu0 0.0
      %88 = vmatprep.subr.mxu0 0.0
      %89 = vmatpush1.msra.mxu0 0.0
      %90 = vmatprep.subr.mxu0 0.0
      %91 = vmatpush1.msra.mxu0 0.0
      %92 = vmatprep.subr.mxu0 0.0
      %93 = vmatpush1.msra.mxu0 0.0
      %94 = vmatprep.subr.mxu0 0.0
      %95 = vmatpush1.msra.mxu0 0.0
      %96 = vmatprep.mubr.f32.mxu0 0.0
      %97 = vmatmul.mubr.f32.gmra.mrb[0].mxu0 %v27
      %v98 = vpop.f32.mrb[0].mxu0
      %v99 = vadd.f32 0.0, %v98
      %v100 = vpop.f32.mrb[0].mxu0
      %101 = vmatprep.mubr.f32.mxu0 0.0
      %102 = vmatmul.mubr.f32.gmra.mrb[0].mxu0 %v30
      %v103 = vpop.f32.mrb[0].mxu0
      %v104 = vadd.f32 0.0, %v103
      %v105 = vpop.f32.mrb[0].mxu0
      %106 = vdwg.mxu0
      %vm107 = vcmask 64512
      %108 = vst.msk [vmem:[#allocation2] sm:$0xff] %vm107, %v99
      %109 = vst.msk [vmem:[#allocation2 + $0x8] sm:$0xff] %vm107, %v104
    $region17: #{tpu_custom_call.1} parent=1 // pred_fallthru
      _
    %v110 = vld [vmem:[#allocation2] sm:$0xff]
    %v111 = vld [vmem:[#allocation2 + $0x8] sm:$0xff]
    %v112 = vld [vmem:[%s2] sm:$0xff]
    %vm113 = vcmask 64512
    %v115 = vsel %vm113, %v110, 0
    %v118 = vsel %vm113, %v111, 0
    %120 = vmatprep.subr.mxu0 0.0
    %121 = vmatpush1.msra.mxu0 %v112
    %122 = vmatprep.subr.mxu0 0.0
    %123 = vmatpush1.msra.mxu0 0.0
    %124 = vmatprep.subr.mxu0 0.0
    %125 = vmatpush1.msra.mxu0 0.0
    %126 = vmatprep.subr.mxu0 0.0
    %127 = vmatpush1.msra.mxu0 0.0
    %128 = vmatprep.subr.mxu0 0.0
    %129 = vmatpush1.msra.mxu0 0.0
    %130 = vmatprep.subr.mxu0 0.0
    %131 = vmatpush1.msra.mxu0 0.0
    %132 = vmatprep.subr.mxu0 0.0
    %133 = vmatpush1.msra.mxu0 0.0
    %134 = vmatprep.subr.mxu0 0.0
    %135 = vmatpush1.msra.mxu0 0.0
    %136 = vmatprep.subr.mxu0 0.0
    %137 = vmatpush1.msra.mxu0 0.0
    %138 = vmatprep.subr.mxu0 0.0
    %139 = vmatpush1.msra.mxu0 0.0
    %140 = vmatprep.subr.mxu0 0.0
    %141 = vmatpush1.msra.mxu0 0.0
    %142 = vmatprep.subr.mxu0 0.0
    %143 = vmatpush1.msra.mxu0 0.0
    %144 = vmatprep.subr.mxu0 0.0
    %145 = vmatpush1.msra.mxu0 0.0
    %146 = vmatprep.subr.mxu0 0.0
    %147 = vmatpush1.msra.mxu0 0.0
    %148 = vmatprep.subr.mxu0 0.0
    %149 = vmatpush1.msra.mxu0 0.0
    %150 = vmatprep.subr.mxu0 0.0
    %151 = vmatpush1.msra.mxu0 0.0
    %152 = vmatprep.subr.mxu0 0.0
    %153 = vmatpush1.msra.mxu0 0.0
    %154 = vmatprep.subr.mxu0 0.0
    %155 = vmatpush1.msra.mxu0 0.0
    %156 = vmatprep.subr.mxu0 0.0
    %157 = vmatpush1.msra.mxu0 0.0
    %158 = vmatprep.subr.mxu0 0.0
    %159 = vmatpush1.msra.mxu0 0.0
    %160 = vmatprep.subr.mxu0 0.0
    %161 = vmatpush1.msra.mxu0 0.0
    %162 = vmatprep.subr.mxu0 0.0
    %163 = vmatpush1.msra.mxu0 0.0
    %164 = vmatprep.subr.mxu0 0.0
    %165 = vmatpush1.msra.mxu0 0.0
    %166 = vmatprep.subr.mxu0 0.0
    %167 = vmatpush1.msra.mxu0 0.0
    %168 = vmatprep.subr.mxu0 0.0
    %169 = vmatpush1.msra.mxu0 0.0
    %170 = vmatprep.subr.mxu0 0.0
    %171 = vmatpush1.msra.mxu0 0.0
    %172 = vmatprep.subr.mxu0 0.0
    %173 = vmatpush1.msra.mxu0 0.0
    %174 = vmatprep.subr.mxu0 0.0
    %175 = vmatpush1.msra.mxu0 0.0
    %176 = vmatprep.subr.mxu0 0.0
    %177 = vmatpush1.msra.mxu0 0.0
    %178 = vmatprep.subr.mxu0 0.0
    %179 = vmatpush1.msra.mxu0 0.0
    %180 = vmatprep.subr.mxu0 0.0
    %181 = vmatpush1.msra.mxu0 0.0
    %182 = vmatprep.subr.mxu0 0.0
    %183 = vmatpush1.msra.mxu0 0.0
    %184 = vmatprep.mubr.f32.mxu0 0.0
    %185 = vmatmul.mubr.f32.gmra.mrb[0].mxu0 %v115
    %v186 = vpop.f32.mrb[0].mxu0
    %v187 = vadd.f32 0.0, %v186
    %v188 = vpop.f32.mrb[0].mxu0
    %189 = vmatprep.mubr.f32.mxu0 0.0
    %190 = vmatmul.mubr.f32.gmra.mrb[0].mxu0 %v118
    %v191 = vpop.f32.mrb[0].mxu0
    %v192 = vadd.f32 0.0, %v191
    %v193 = vpop.f32.mrb[0].mxu0
    %194 = vdwg.mxu0
    %vm195 = vcmask 261120
    %196 = vst.msk [vmem:[#allocation3] sm:$0xff] %vm195, %v187
    %197 = vst.msk [vmem:[#allocation3 + $0x8] sm:$0xff] %vm195, %v192
    // Predicated region
    $region18: #{tpu_custom_call.1} parent=1 // pred_check
      _
    $region19: #{tpu_custom_call.1} parent=1 // pred_check_branch
      %199 = sbr.rel (0) target = $region21
    $region20: #{tpu_custom_call.1} parent=1 // pred_region
      %s201 = ssub.s32 256, 256
      %202 = vsyncadd [#allocation4], %s201
      %s203 = sshll.u32 [#allocation3], 4
      %s204 = int_to_ptr.vmem [resolvable:$true] %s203
      %209 = dma.vmem_to_hbm [thread:$0]  %s204, 256, %s3, [#allocation4], 128, 128, 8
    $region21: #{tpu_custom_call.1} parent=1 // pred_fallthru
      _
    // Predicated region
    $region22: #{tpu_custom_call.1} parent=1 // pred_check
      _
    $region23: #{tpu_custom_call.1} parent=1 // pred_check_branch
      %211 = sbr.rel (0) target = $region25
    $region24: #{tpu_custom_call.1} parent=1 // pred_region
      %212 = dma.done [#allocation4], 256
    $region25: #{tpu_custom_call.1} parent=1 // pred_fallthru
      _
    %213 = vsyncpa [#allocation4], 1

</llo_original>
